<compile_context>
chip_gen: v7x
topology: tpu7x:2x2x1
jax: 0.10.0
libtpu: 0.0.40
codegen_flags: <defaults>
</compile_context>

<pallas_src>
import jax
import jax.numpy as jnp
from jax.experimental import pallas as pl
from jax.experimental.pallas import tpu as pltpu


def _banded_weights(w_hwio, W):
    """Fold the 3 kw taps of a 3x3 conv into width-banded matmul matrices.

    w_hwio: (3, 3, Cin, Cout)  ->  (3, W*Cin, W*Cout), one banded matrix per kernel row kh.
    Output column block w_out reads input column blocks w_out-1, w_out, w_out+1 (clipped at
    the image edge, implementing the zero 'same' padding along W).
    """
    _, _, Cin, Cout = w_hwio.shape
    mats = []
    for kh in range(3):
        big = jnp.zeros((W, Cin, W, Cout), w_hwio.dtype)
        for kw in range(3):
            dw = kw - 1
            w_out = jnp.arange(max(0, -dw), W - max(0, dw))
            w_in = w_out + dw
            big = big.at[w_in, :, w_out, :].set(w_hwio[kh, kw])
        mats.append(big.reshape(W * Cin, W * Cout))
    return jnp.stack(mats, axis=0)


def _make_double_conv_kernel(H):
    def double_conv_kernel(x_ref, wb1_ref, b1_ref, wb2_ref, b2_ref, o_ref):
        # x_ref:   (M, W*Cin)          bf16 lane-dense rows (M = images_per_step * H)
        # wb1_ref: (3, W*Cin,  W*Cmid) bf16 banded weights (kh = 0, 1, 2)
        # wb2_ref: (3, W*Cmid, W*Cout) bf16 banded weights
        # b1/b2:   (1, W*C)            f32 bias tiled over W (lane-dense)
        # o_ref:   (M, W*Cout)         bf16 lane-dense output
        M = x_ref.shape[0]

        # Per-image row index: block rows are always aligned to whole images, so rolling
        # across image boundaries is corrected by masking rows h==0 / h==H-1.
        row = jax.lax.broadcasted_iota(jnp.int32, (M, 1), 0)
        h = row % H
        top = h == 0          # no h-1 neighbour inside this image
        bot = h == H - 1      # no h+1 neighbour inside this image

        def conv3x3(src_bf16, wb_ref, b_ref):
            # Three fat MXU matmuls from the SAME unshifted bf16 source; the +/-1 row
            # shift happens on the f32 partial sums via XLU rolls + boundary masks.
            q0 = jnp.dot(src_bf16, wb_ref[0], preferred_element_type=jnp.float32)
            q1 = jnp.dot(src_bf16, wb_ref[1], preferred_element_type=jnp.float32)
            q2 = jnp.dot(src_bf16, wb_ref[2], preferred_element_type=jnp.float32)
            up = jnp.where(top, 0.0, pltpu.roll(q0, shift=1, axis=0))      # q0[h-1]
            dn = jnp.where(bot, 0.0, pltpu.roll(q2, shift=M - 1, axis=0))  # q2[h+1]
            return jnp.maximum(q1 + up + dn + b_ref[...], 0.0)             # bias+ReLU f32

        y1 = conv3x3(x_ref[...], wb1_ref, b1_ref)                 # (M, W*Cmid) f32
        y2 = conv3x3(y1.astype(jnp.bfloat16), wb2_ref, b2_ref)    # (M, W*Cout) f32
        o_ref[...] = y2.astype(o_ref.dtype)                       # bf16 full-lane store

    return double_conv_kernel


def double_conv_nchw(x_nchw, w1, b1, w2, b2):
    """PyTorch-parity DoubleConv forward: NCHW in / NCHW out (kernel runs lane-dense)."""
    N, Cin, H, W = x_nchw.shape
    Cmid = w1.shape[3]
    Cout = w2.shape[3]

    # Lane-dense activation rows: (N*H, W*Cin) bf16.
    x_rows = jnp.transpose(x_nchw, (0, 2, 3, 1)).reshape(N * H, W * Cin)
    x_rows = x_rows.astype(jnp.bfloat16)

    # Pack several whole images per grid step so the matmul M-dim fills the MXU.
    b_tile = min(N, max(1, pl.cdiv(128, H)))
    n_tiles = pl.cdiv(N, b_tile)
    n_pad = n_tiles * b_tile
    if n_pad != N:
        pad = jnp.zeros(((n_pad - N) * H, W * Cin), x_rows.dtype)
        x_rows = jnp.concatenate([x_rows, pad], axis=0)
    m_tile = b_tile * H

    # Pre-packed parameters (DMA'd once; constant index_maps keep them resident).
    wb1 = _banded_weights(w1, W).astype(jnp.bfloat16)                   # (3, W*Cin,  W*Cmid)
    wb2 = _banded_weights(w2, W).astype(jnp.bfloat16)                   # (3, W*Cmid, W*Cout)
    bb1 = jnp.tile(b1.reshape(1, Cmid).astype(jnp.float32), (1, W))     # (1, W*Cmid)
    bb2 = jnp.tile(b2.reshape(1, Cout).astype(jnp.float32), (1, W))     # (1, W*Cout)

    out_rows = pl.pallas_call(
        _make_double_conv_kernel(H),
        out_shape=jax.ShapeDtypeStruct((n_pad * H, W * Cout), jnp.bfloat16),
        grid_spec=pltpu.PrefetchScalarGridSpec(
            num_scalar_prefetch=0,
            grid=(n_tiles,),
            in_specs=[
                pl.BlockSpec((m_tile, W * Cin), lambda i: (i, 0)),
                pl.BlockSpec((3, W * Cin, W * Cmid), lambda i: (0, 0, 0)),
                pl.BlockSpec((1, W * Cmid), lambda i: (0, 0)),
                pl.BlockSpec((3, W * Cmid, W * Cout), lambda i: (0, 0, 0)),
                pl.BlockSpec((1, W * Cout), lambda i: (0, 0)),
            ],
            out_specs=pl.BlockSpec((m_tile, W * Cout), lambda i: (i, 0)),
        ),
        compiler_params=pltpu.CompilerParams(
            dimension_semantics=("parallel",)),
    )(x_rows, wb1, bb1, wb2, bb2)

    out = out_rows[:N * H].reshape(N, H, W, Cout)
    return jnp.transpose(out, (0, 3, 1, 2)).astype(jnp.float32)


def _ref_double_conv_nchw(x, w1, b1, w2, b2):
    # f32 XLA reference on the same bf16-rounded operands the kernel consumes
    # (inputs, weights and the intermediate activation are rounded to bf16).
    def r(a):
        return a.astype(jnp.bfloat16).astype(jnp.float32)

    dn = ("NHWC", "HWIO", "NHWC")
    x_nhwc = jnp.transpose(r(x), (0, 2, 3, 1))
    y = jax.lax.conv_general_dilated(x_nhwc, r(w1), (1, 1), "SAME",
                                     dimension_numbers=dn) + b1
    y = jnp.maximum(y, 0.0)
    y = jax.lax.conv_general_dilated(r(y), r(w2), (1, 1), "SAME",
                                     dimension_numbers=dn) + b2
    y = jnp.maximum(y, 0.0)
    return jnp.transpose(y, (0, 3, 1, 2))


if __name__ == "__main__":
    in_channels, out_channels = 4, 8
    N, H, W = 2, 16, 16

    key = jax.random.PRNGKey(0)
    kx, kw1, kb1, kw2, kb2 = jax.random.split(key, 5)

    # Deterministic synthetic parameters (shapes match nn.Conv2d(3x3, pad=1), HWIO).
    x = jax.random.normal(kx, (N, in_channels, H, W), jnp.float32)                     # NCHW
    w1 = jax.random.normal(kw1, (3, 3, in_channels, out_channels), jnp.float32) * 0.1
    b1 = jax.random.normal(kb1, (1, out_channels), jnp.float32) * 0.1
    w2 = jax.random.normal(kw2, (3, 3, out_channels, out_channels), jnp.float32) * 0.1
    b2 = jax.random.normal(kb2, (1, out_channels), jnp.float32) * 0.1

    out = jax.block_until_ready(jax.jit(double_conv_nchw)(x, w1, b1, w2, b2))

    ref = _ref_double_conv_nchw(x, w1, b1, w2, b2)
    assert out.shape == (N, out_channels, H, W)
    max_err = float(jnp.max(jnp.abs(out - ref)))
    assert jnp.allclose(out, ref, atol=2e-2, rtol=2e-2), f"max abs err {max_err}"

    print("KERNEL_OK")
</pallas_src>

<mosaic_0001>
module attributes {stable_mosaic.version = 11 : i64} {
  func.func @double_conv_kernel(%arg0: i32, %arg1: memref<32x64xbf16, #tpu.memory_space<vmem>>, %arg2: memref<3x64x128xbf16, #tpu.memory_space<vmem>>, %arg3: memref<1x128xf32, #tpu.memory_space<vmem>>, %arg4: memref<3x128x128xbf16, #tpu.memory_space<vmem>>, %arg5: memref<1x128xf32, #tpu.memory_space<vmem>>, %arg6: memref<32x128xbf16, #tpu.memory_space<vmem>>) attributes {dimension_semantics = [#tpu.dimension_semantics<parallel>], iteration_bounds = array<i64: 1>, scalar_prefetch = 0 : i64, scratch_operands = 0 : i64, tpu.core_type = #tpu.core_type<tc>, window_params = [{transform_indices = @transform_0, window_bounds = array<i64: 32, 64>}, {pipeline_mode = #tpu.pipeline_mode<synchronous>, transform_indices = @transform_1, window_bounds = array<i64: 3, 64, 128>}, {pipeline_mode = #tpu.pipeline_mode<synchronous>, transform_indices = @transform_2, window_bounds = array<i64: 1, 128>}, {pipeline_mode = #tpu.pipeline_mode<synchronous>, transform_indices = @transform_3, window_bounds = array<i64: 3, 128, 128>}, {pipeline_mode = #tpu.pipeline_mode<synchronous>, transform_indices = @transform_4, window_bounds = array<i64: 1, 128>}, {transform_indices = @transform_5, window_bounds = array<i64: 32, 128>}]} {
    %0 = tpu.iota {dimensions = array<i32: 0>} : vector<32x1xi32>
    %c16_i32 = arith.constant 16 : i32
    %c0_i32 = arith.constant 0 : i32
    %1 = arith.cmpi eq, %c16_i32, %c0_i32 : i32
    %c1_i32 = arith.constant 1 : i32
    %2 = arith.select %1, %c1_i32, %c16_i32 : i32
    %3 = vector.broadcast %2 : i32 to vector<32x1xi32>
    %4 = arith.remsi %0, %3 : vector<32x1xi32>
    %c0_i32_0 = arith.constant 0 : i32
    %5 = vector.broadcast %c0_i32_0 : i32 to vector<32x1xi32>
    %6 = arith.cmpi ne, %4, %5 : vector<32x1xi32>
    %c0_i32_1 = arith.constant 0 : i32
    %7 = vector.broadcast %c0_i32_1 : i32 to vector<32x1xi32>
    %8 = arith.cmpi slt, %4, %7 : vector<32x1xi32>
    %c0_i32_2 = arith.constant 0 : i32
    %9 = arith.cmpi slt, %2, %c0_i32_2 : i32
    %10 = vector.broadcast %9 : i1 to vector<32x1xi1>
    %11 = vector.broadcast %10 : vector<32x1xi1> to vector<32x1xi1>
    %12 = arith.xori %8, %11 : vector<32x1xi1>
    %13 = arith.andi %12, %6 : vector<32x1xi1>
    %14 = vector.broadcast %2 : i32 to vector<32x1xi32>
    %15 = arith.addi %4, %14 : vector<32x1xi32>
    %16 = arith.select %13, %15, %4 : vector<32x1xi1>, vector<32x1xi32>
    %c0_i32_3 = arith.constant 0 : i32
    %17 = vector.broadcast %c0_i32_3 : i32 to vector<32x1xi32>
    %18 = arith.cmpi eq, %16, %17 : vector<32x1xi32>
    %c15_i32 = arith.constant 15 : i32
    %19 = vector.broadcast %c15_i32 : i32 to vector<32x1xi32>
    %20 = arith.cmpi eq, %16, %19 : vector<32x1xi32>
    %c0 = arith.constant 0 : index
    %c0_4 = arith.constant 0 : index
    %21 = vector.load %arg1[%c0, %c0_4] : memref<32x64xbf16, #tpu.memory_space<vmem>>, vector<32x64xbf16>
    %c0_5 = arith.constant 0 : index
    %c0_6 = arith.constant 0 : index
    %c0_7 = arith.constant 0 : index
    %22 = vector.load %arg2[%c0_5, %c0_6, %c0_7] : memref<3x64x128xbf16, #tpu.memory_space<vmem>>, vector<1x64x128xbf16>
    %23 = vector.shape_cast %22 : vector<1x64x128xbf16> to vector<64x128xbf16>
    %cst = arith.constant dense<0.000000e+00> : vector<32x128xf32>
    %24 = tpu.matmul %21, %23, %cst {dimension_numbers = #tpu.dot_dimension_numbers<[1], [0], [0], [1], [0, 0, 1, 1], [], []>} : vector<32x64xbf16>, vector<64x128xbf16>, vector<32x128xf32> -> vector<32x128xf32>
    %c1 = arith.constant 1 : index
    %c0_8 = arith.constant 0 : index
    %c0_9 = arith.constant 0 : index
    %25 = vector.load %arg2[%c1, %c0_8, %c0_9] : memref<3x64x128xbf16, #tpu.memory_space<vmem>>, vector<1x64x128xbf16>
    %26 = vector.shape_cast %25 : vector<1x64x128xbf16> to vector<64x128xbf16>
    %cst_10 = arith.constant dense<0.000000e+00> : vector<32x128xf32>
    %27 = tpu.matmul %21, %26, %cst_10 {dimension_numbers = #tpu.dot_dimension_numbers<[1], [0], [0], [1], [0, 0, 1, 1], [], []>} : vector<32x64xbf16>, vector<64x128xbf16>, vector<32x128xf32> -> vector<32x128xf32>
    %c2 = arith.constant 2 : index
    %c0_11 = arith.constant 0 : index
    %c0_12 = arith.constant 0 : index
    %28 = vector.load %arg2[%c2, %c0_11, %c0_12] : memref<3x64x128xbf16, #tpu.memory_space<vmem>>, vector<1x64x128xbf16>
    %29 = vector.shape_cast %28 : vector<1x64x128xbf16> to vector<64x128xbf16>
    %cst_13 = arith.constant dense<0.000000e+00> : vector<32x128xf32>
    %30 = tpu.matmul %21, %29, %cst_13 {dimension_numbers = #tpu.dot_dimension_numbers<[1], [0], [0], [1], [0, 0, 1, 1], [], []>} : vector<32x64xbf16>, vector<64x128xbf16>, vector<32x128xf32> -> vector<32x128xf32>
    %c1_i32_14 = arith.constant 1 : i32
    %31 = tpu.dynamic_rotate %24 by %c1_i32_14 dim 0 : vector<32x128xf32>, i32 -> vector<32x128xf32>
    %cst_15 = arith.constant 0.000000e+00 : f32
    %32 = vector.shape_cast %18 : vector<32x1xi1> to vector<32x1xi1>
    %33 = vector.broadcast %32 : vector<32x1xi1> to vector<32x128xi1>
    %34 = vector.broadcast %cst_15 : f32 to vector<32x128xf32>
    %35 = arith.select %33, %34, %31 : vector<32x128xi1>, vector<32x128xf32>
    %c31_i32 = arith.constant 31 : i32
    %36 = tpu.dynamic_rotate %30 by %c31_i32 dim 0 : vector<32x128xf32>, i32 -> vector<32x128xf32>
    %cst_16 = arith.constant 0.000000e+00 : f32
    %37 = vector.shape_cast %20 : vector<32x1xi1> to vector<32x1xi1>
    %38 = vector.broadcast %37 : vector<32x1xi1> to vector<32x128xi1>
    %39 = vector.broadcast %cst_16 : f32 to vector<32x128xf32>
    %40 = arith.select %38, %39, %36 : vector<32x128xi1>, vector<32x128xf32>
    %41 = arith.addf %27, %35 : vector<32x128xf32>
    %42 = arith.addf %41, %40 : vector<32x128xf32>
    %c0_17 = arith.constant 0 : index
    %c0_18 = arith.constant 0 : index
    %43 = vector.load %arg3[%c0_17, %c0_18] : memref<1x128xf32, #tpu.memory_space<vmem>>, vector<1x128xf32>
    %44 = vector.broadcast %43 : vector<1x128xf32> to vector<32x128xf32>
    %45 = arith.addf %42, %44 : vector<32x128xf32>
    %cst_19 = arith.constant 0.000000e+00 : f32
    %46 = vector.broadcast %cst_19 : f32 to vector<32x128xf32>
    %47 = arith.maximumf %45, %46 : vector<32x128xf32>
    %48 = arith.truncf %47 : vector<32x128xf32> to vector<32x128xbf16>
    %c0_20 = arith.constant 0 : index
    %c0_21 = arith.constant 0 : index
    %c0_22 = arith.constant 0 : index
    %49 = vector.load %arg4[%c0_20, %c0_21, %c0_22] : memref<3x128x128xbf16, #tpu.memory_space<vmem>>, vector<1x128x128xbf16>
    %50 = vector.shape_cast %49 : vector<1x128x128xbf16> to vector<128x128xbf16>
    %cst_23 = arith.constant dense<0.000000e+00> : vector<32x128xf32>
    %51 = tpu.matmul %48, %50, %cst_23 {dimension_numbers = #tpu.dot_dimension_numbers<[1], [0], [0], [1], [0, 0, 1, 1], [], []>} : vector<32x128xbf16>, vector<128x128xbf16>, vector<32x128xf32> -> vector<32x128xf32>
    %c1_24 = arith.constant 1 : index
    %c0_25 = arith.constant 0 : index
    %c0_26 = arith.constant 0 : index
    %52 = vector.load %arg4[%c1_24, %c0_25, %c0_26] : memref<3x128x128xbf16, #tpu.memory_space<vmem>>, vector<1x128x128xbf16>
    %53 = vector.shape_cast %52 : vector<1x128x128xbf16> to vector<128x128xbf16>
    %cst_27 = arith.constant dense<0.000000e+00> : vector<32x128xf32>
    %54 = tpu.matmul %48, %53, %cst_27 {dimension_numbers = #tpu.dot_dimension_numbers<[1], [0], [0], [1], [0, 0, 1, 1], [], []>} : vector<32x128xbf16>, vector<128x128xbf16>, vector<32x128xf32> -> vector<32x128xf32>
    %c2_28 = arith.constant 2 : index
    %c0_29 = arith.constant 0 : index
    %c0_30 = arith.constant 0 : index
    %55 = vector.load %arg4[%c2_28, %c0_29, %c0_30] : memref<3x128x128xbf16, #tpu.memory_space<vmem>>, vector<1x128x128xbf16>
    %56 = vector.shape_cast %55 : vector<1x128x128xbf16> to vector<128x128xbf16>
    %cst_31 = arith.constant dense<0.000000e+00> : vector<32x128xf32>
    %57 = tpu.matmul %48, %56, %cst_31 {dimension_numbers = #tpu.dot_dimension_numbers<[1], [0], [0], [1], [0, 0, 1, 1], [], []>} : vector<32x128xbf16>, vector<128x128xbf16>, vector<32x128xf32> -> vector<32x128xf32>
    %c1_i32_32 = arith.constant 1 : i32
    %58 = tpu.dynamic_rotate %51 by %c1_i32_32 dim 0 : vector<32x128xf32>, i32 -> vector<32x128xf32>
    %cst_33 = arith.constant 0.000000e+00 : f32
    %59 = vector.shape_cast %18 : vector<32x1xi1> to vector<32x1xi1>
    %60 = vector.broadcast %59 : vector<32x1xi1> to vector<32x128xi1>
    %61 = vector.broadcast %cst_33 : f32 to vector<32x128xf32>
    %62 = arith.select %60, %61, %58 : vector<32x128xi1>, vector<32x128xf32>
    %c31_i32_34 = arith.constant 31 : i32
    %63 = tpu.dynamic_rotate %57 by %c31_i32_34 dim 0 : vector<32x128xf32>, i32 -> vector<32x128xf32>
    %cst_35 = arith.constant 0.000000e+00 : f32
    %64 = vector.shape_cast %20 : vector<32x1xi1> to vector<32x1xi1>
    %65 = vector.broadcast %64 : vector<32x1xi1> to vector<32x128xi1>
    %66 = vector.broadcast %cst_35 : f32 to vector<32x128xf32>
    %67 = arith.select %65, %66, %63 : vector<32x128xi1>, vector<32x128xf32>
    %68 = arith.addf %54, %62 : vector<32x128xf32>
    %69 = arith.addf %68, %67 : vector<32x128xf32>
    %c0_36 = arith.constant 0 : index
    %c0_37 = arith.constant 0 : index
    %70 = vector.load %arg5[%c0_36, %c0_37] : memref<1x128xf32, #tpu.memory_space<vmem>>, vector<1x128xf32>
    %71 = vector.broadcast %70 : vector<1x128xf32> to vector<32x128xf32>
    %72 = arith.addf %69, %71 : vector<32x128xf32>
    %cst_38 = arith.constant 0.000000e+00 : f32
    %73 = vector.broadcast %cst_38 : f32 to vector<32x128xf32>
    %74 = arith.maximumf %72, %73 : vector<32x128xf32>
    %75 = arith.truncf %74 : vector<32x128xf32> to vector<32x128xbf16>
    %c0_39 = arith.constant 0 : index
    %c0_40 = arith.constant 0 : index
    %76 = vector.load %arg6[%c0_39, %c0_40] : memref<32x128xbf16, #tpu.memory_space<vmem>>, vector<32x128xbf16>
    tpu.vector_store %arg6[%c0_39, %c0_40], %75 {strides = array<i32>} : memref<32x128xbf16, #tpu.memory_space<vmem>>, vector<32x128xbf16>,
    return
  }
  func.func @transform_0(%arg0: i32) -> (i32, i32) {
    %c0_i32 = arith.constant 0 : i32
    %c0_i32_0 = arith.constant 0 : i32
    return %arg0, %c0_i32 : i32, i32
  }
  func.func @transform_1(%arg0: i32) -> (i32, i32, i32) {
    %c0_i32 = arith.constant 0 : i32
    %c0_i32_0 = arith.constant 0 : i32
    %c0_i32_1 = arith.constant 0 : i32
    %c0_i32_2 = arith.constant 0 : i32
    return %c0_i32, %c0_i32_0, %c0_i32_1 : i32, i32, i32
  }
  func.func @transform_2(%arg0: i32) -> (i32, i32) {
    %c0_i32 = arith.constant 0 : i32
    %c0_i32_0 = arith.constant 0 : i32
    %c0_i32_1 = arith.constant 0 : i32
    return %c0_i32, %c0_i32_0 : i32, i32
  }
  func.func @transform_3(%arg0: i32) -> (i32, i32, i32) {
    %c0_i32 = arith.constant 0 : i32
    %c0_i32_0 = arith.constant 0 : i32
    %c0_i32_1 = arith.constant 0 : i32
    %c0_i32_2 = arith.constant 0 : i32
    return %c0_i32, %c0_i32_0, %c0_i32_1 : i32, i32, i32
  }
  func.func @transform_4(%arg0: i32) -> (i32, i32) {
    %c0_i32 = arith.constant 0 : i32
    %c0_i32_0 = arith.constant 0 : i32
    %c0_i32_1 = arith.constant 0 : i32
    return %c0_i32, %c0_i32_0 : i32, i32
  }
  func.func @transform_5(%arg0: i32) -> (i32, i32) {
    %c0_i32 = arith.constant 0 : i32
    %c0_i32_0 = arith.constant 0 : i32
    return %arg0, %c0_i32 : i32, i32
  }
}

</mosaic_0001>

<llo_original>
// kernel: double_conv_nchw.1
$region0: #{double_conv_nchw.1}
  #allocation0 [shape = 'u32[]', space=smem, size = 0x4, offset = 0x4, fixed_abs, tag = 'smem constant byte address 0x4 - core index']
  #allocation1 [shape = 'u32[144,128]{1,0:T(1,128)}', space=vmem, size = 0x12000, scoped, tag = 'internal scratch']
  %s0 = inlined_call_operand.vmem [shape: bf16[32,64], index: 0, kind: input, shape index: {}]
  %s1 = inlined_call_operand.vmem [shape: bf16[3,64,128], index: 1, kind: input, shape index: {}]
  %s2 = inlined_call_operand.vmem [shape: f32[1,128], index: 2, kind: input, shape index: {}]
  %s3 = inlined_call_operand.vmem [shape: bf16[3,128,128], index: 3, kind: input, shape index: {}]
  %s4 = inlined_call_operand.vmem [shape: f32[1,128], index: 4, kind: input, shape index: {}]
  %s5 = inlined_call_operand.vmem [shape: bf16[32,128], index: 5, kind: output, shape index: {}]
  %s6 = sld [smem:[#allocation0]]
  $region30: #{double_conv_nchw.1} parent=0
    _
  %s8 = ssub.s32 1, %s6
  %s9 = scalar_select 0, %s8, %s6
  // Predicated region
  $region2: #{double_conv_nchw.1} parent=0 // pred_check
    _
  $region3: #{double_conv_nchw.1} parent=0 // pred_check_branch
    %11 = sbr.rel (0) target = $region5
  $region4: #{double_conv_nchw.1} parent=0 // pred_region
    _
  $region5: #{double_conv_nchw.1} parent=0 // pred_fallthru
    _
  // Predicated region
  $region6: #{double_conv_nchw.1} parent=0 // pred_check
    _
  $region7: #{double_conv_nchw.1} parent=0 // pred_check_branch
    %13 = sbr.rel (0) target = $region9
  $region8: #{double_conv_nchw.1} parent=0 // pred_region
    _
  $region9: #{double_conv_nchw.1} parent=0 // pred_fallthru
    _
  // Predicated region
  $region10: #{double_conv_nchw.1} parent=0 // pred_check
    _
  $region11: #{double_conv_nchw.1} parent=0 // pred_check_branch
    %15 = sbr.rel (0) target = $region13
  $region12: #{double_conv_nchw.1} parent=0 // pred_region
    _
  $region13: #{double_conv_nchw.1} parent=0 // pred_fallthru
    _
  // Predicated region
  $region14: #{double_conv_nchw.1} parent=0 // pred_check
    _
  $region15: #{double_conv_nchw.1} parent=0 // pred_check_branch
    %17 = sbr.rel (0) target = $region17
  $region16: #{double_conv_nchw.1} parent=0 // pred_region
    _
  $region17: #{double_conv_nchw.1} parent=0 // pred_fallthru
    _
  // Predicated region
  $region18: #{double_conv_nchw.1} parent=0 // pred_check
    _
  $region19: #{double_conv_nchw.1} parent=0 // pred_check_branch
    %19 = sbr.rel (0) target = $region21
  $region20: #{double_conv_nchw.1} parent=0 // pred_region
    _
  $region21: #{double_conv_nchw.1} parent=0 // pred_fallthru
    _
  %v21 = vlaneseq
  %v22 = vshrl.u32 %v21, 7
  %v23 = vadd.s32 %v22, 8
  %v24 = vadd.s32 %v22, 16
  %v25 = vadd.s32 %v22, 24
  %vm26 = vcmp.lt.s32.totalorder %v22, 0
  %v27 = vsub.s32 0, %v22
  %v28 = vsel %vm26, %v27, %v22
  %v29 = vshrl.u32 %v28, 4
  %v30 = vand.u32 %v28, 15
  %v31 = vsub.s32 0, %v30
  %v32 = vsel %vm26, %v31, %v30
  %vm33 = vcmp.lt.s32.totalorder %v23, 0
  %v34 = vsub.s32 0, %v23
  %v35 = vsel %vm33, %v34, %v23
  %v36 = vshrl.u32 %v35, 4
  %v37 = vand.u32 %v35, 15
  %v38 = vsub.s32 0, %v37
  %v39 = vsel %vm33, %v38, %v37
  %vm40 = vcmp.lt.s32.totalorder %v24, 0
  %v41 = vsub.s32 0, %v24
  %v42 = vsel %vm40, %v41, %v24
  %v43 = vshrl.u32 %v42, 4
  %v44 = vand.u32 %v42, 15
  %v45 = vsub.s32 0, %v44
  %v46 = vsel %vm40, %v45, %v44
  %vm47 = vcmp.lt.s32.totalorder %v25, 0
  %v48 = vsub.s32 0, %v25
  %v49 = vsel %vm47, %v48, %v25
  %v50 = vshrl.u32 %v49, 4
  %v51 = vand.u32 %v49, 15
  %v52 = vsub.s32 0, %v51
  %v53 = vsel %vm47, %v52, %v51
  %vm54 = vcmp.ne.s32.totalorder %v32, 0
  %vm55 = vcmp.ne.s32.totalorder %v39, 0
  %vm56 = vcmp.ne.s32.totalorder %v46, 0
  %vm57 = vcmp.ne.s32.totalorder %v53, 0
  %vm58 = vcmp.lt.s32.totalorder %v32, 0
  %vm59 = vcmp.lt.s32.totalorder %v39, 0
  %vm60 = vcmp.lt.s32.totalorder %v46, 0
  %vm61 = vcmp.lt.s32.totalorder %v53, 0
  %vm62 = vmand %vm58, %vm54
  %vm63 = vmand %vm59, %vm55
  %vm64 = vmand %vm60, %vm56
  %vm65 = vmand %vm61, %vm57
  %v66 = vadd.s32 %v32, 16
  %v67 = vadd.s32 %v39, 16
  %v68 = vadd.s32 %v46, 16
  %v69 = vadd.s32 %v53, 16
  %v70 = vsel %vm62, %v66, %v32
  %v71 = vsel %vm63, %v67, %v39
  %v72 = vsel %vm64, %v68, %v46
  %v73 = vsel %vm65, %v69, %v53
  %vm74 = vcmp.eq.s32.totalorder %v70, 0
  %vm75 = vcmp.eq.s32.totalorder %v71, 0
  %vm76 = vcmp.eq.s32.totalorder %v72, 0
  %vm77 = vcmp.eq.s32.totalorder %v73, 0
  %vm78 = vcmp.eq.s32.totalorder %v70, 15
  %vm79 = vcmp.eq.s32.totalorder %v71, 15
  %vm80 = vcmp.eq.s32.totalorder %v72, 15
  %vm81 = vcmp.eq.s32.totalorder %v73, 15
  %v82 = vld [vmem:[%s0] sm:$0xf]
  %v83 = vld [vmem:[%s0 + $0x4] sm:$0xf]
  %v84 = vld [vmem:[%s0 + $0x8] sm:$0xf]
  %v85 = vld [vmem:[%s0 + $0xc] sm:$0xf]
  %v86 = vld [vmem:[%s1] sm:$0xf]
  %v87 = vld [vmem:[%s1 + $0x4] sm:$0xf]
  %v88 = vld [vmem:[%s1 + $0x8] sm:$0xf]
  %v89 = vld [vmem:[%s1 + $0xc] sm:$0xf]
  %v90 = vld [vmem:[%s1 + $0x10] sm:$0xf]
  %v91 = vld [vmem:[%s1 + $0x14] sm:$0xf]
  %v92 = vld [vmem:[%s1 + $0x18] sm:$0xf]
  %v93 = vld [vmem:[%s1 + $0x1c] sm:$0xf]
  %v98 = vunpack.c.l.b16 %v82
  %v99 = vunpack.c.l.b16 %v83
  %v100 = vunpack.c.l.b16 %v84
  %v101 = vunpack.c.l.b16 %v85
  %v102 = vpack.c.b16 %v99, %v98
  %v103 = vpack.c.b16 %v101, %v100
  %v112 = vunpack.c.l.b16 %v86
  %v113 = vunpack.c.l.b16 %v87
  %v114 = vunpack.c.l.b16 %v88
  %v115 = vunpack.c.l.b16 %v89
  %v116 = vunpack.c.l.b16 %v90
  %v117 = vunpack.c.l.b16 %v91
  %v118 = vunpack.c.l.b16 %v92
  %v119 = vunpack.c.l.b16 %v93
  %v120 = vpack.c.b16 %v113, %v112
  %v121 = vpack.c.b16 %v115, %v114
  %v122 = vpack.c.b16 %v117, %v116
  %v123 = vpack.c.b16 %v119, %v118
  %vm128 = vcmask 523264
  %v130 = vsel %vm128, %v102, 0
  %v133 = vsel %vm128, %v103, 0
  %135 = vmatprep.subr.bf16.mxu0 0
  %136 = vmatpush1.bf16.msra.mxu0 %v120
  %137 = vmatprep.subr.bf16.mxu0 0
  %138 = vmatpush1.bf16.msra.mxu0 %v121
  %139 = vmatprep.subr.bf16.mxu0 0
  %140 = vmatpush1.bf16.msra.mxu0 %v122
  %141 = vmatprep.subr.bf16.mxu0 0
  %142 = vmatpush1.bf16.msra.mxu0 %v123
  %143 = vmatprep.subr.bf16.mxu0 0
  %144 = vmatpush1.bf16.msra.mxu0 0
  %145 = vmatprep.subr.bf16.mxu0 0
  %146 = vmatpush1.bf16.msra.mxu0 0
  %147 = vmatprep.subr.bf16.mxu0 0
  %148 = vmatpush1.bf16.msra.mxu0 0
  %149 = vmatprep.subr.bf16.mxu0 0
  %150 = vmatpush1.bf16.msra.mxu0 0
  %151 = vmatprep.subr.bf16.mxu0 0
  %152 = vmatpush1.bf16.msra.mxu0 0
  %153 = vmatprep.subr.bf16.mxu0 0
  %154 = vmatpush1.bf16.msra.mxu0 0
  %155 = vmatprep.subr.bf16.mxu0 0
  %156 = vmatpush1.bf16.msra.mxu0 0
  %157 = vmatprep.subr.bf16.mxu0 0
  %158 = vmatpush1.bf16.msra.mxu0 0
  %159 = vmatprep.subr.bf16.mxu0 0
  %160 = vmatpush1.bf16.msra.mxu0 0
  %161 = vmatprep.subr.bf16.mxu0 0
  %162 = vmatpush1.bf16.msra.mxu0 0
  %163 = vmatprep.subr.bf16.mxu0 0
  %164 = vmatpush1.bf16.msra.mxu0 0
  %165 = vmatprep.subr.bf16.mxu0 0
  %166 = vmatpush1.bf16.msra.mxu0 0
  %167 = vmatprep.mubr.bf16.mxu0 0
  %168 = vmatmul.mubr.bf16.gmra.mrb[0].mxu0 %v130
  %v169 = vpop.f32.mrb[0].mxu0
  %v170 = vadd.f32 0.0, %v169
  %v171 = vpop.f32.mrb[0].mxu0
  %v172 = vpop.f32.mrb[0].mxu0
  %v173 = vadd.f32 0.0, %v172
  %v174 = vpop.f32.mrb[0].mxu0
  %175 = vmatprep.mubr.bf16.mxu0 0
  %176 = vmatmul.mubr.bf16.gmra.mrb[0].mxu0 %v133
  %v177 = vpop.f32.mrb[0].mxu0
  %v178 = vadd.f32 0.0, %v177
  %v179 = vpop.f32.mrb[0].mxu0
  %v180 = vpop.f32.mrb[0].mxu0
  %v181 = vadd.f32 0.0, %v180
  %v182 = vpop.f32.mrb[0].mxu0
  %183 = vdwg.mxu0
  %s184 = scalar_lea.vmem %s1, 32
  %v185 = vld [vmem:[%s184] sm:$0xf]
  %v186 = vld [vmem:[%s184 + $0x4] sm:$0xf]
  %v187 = vld [vmem:[%s184 + $0x8] sm:$0xf]
  %v188 = vld [vmem:[%s184 + $0xc] sm:$0xf]
  %v189 = vld [vmem:[%s184 + $0x10] sm:$0xf]
  %v190 = vld [vmem:[%s184 + $0x14] sm:$0xf]
  %v191 = vld [vmem:[%s184 + $0x18] sm:$0xf]
  %v192 = vld [vmem:[%s184 + $0x1c] sm:$0xf]
  %s193 = scalar_lea.vmem %s1, 64
  %v194 = vld [vmem:[%s193] sm:$0xf]
  %v195 = vld [vmem:[%s193 + $0x4] sm:$0xf]
  %v196 = vld [vmem:[%s193 + $0x8] sm:$0xf]
  %v197 = vld [vmem:[%s193 + $0xc] sm:$0xf]
  %v198 = vld [vmem:[%s193 + $0x10] sm:$0xf]
  %v199 = vld [vmem:[%s193 + $0x14] sm:$0xf]
  %v200 = vld [vmem:[%s193 + $0x18] sm:$0xf]
  %v201 = vld [vmem:[%s193 + $0x1c] sm:$0xf]
  %v210 = vunpack.c.l.b16 %v194
  %v211 = vunpack.c.l.b16 %v195
  %v212 = vunpack.c.l.b16 %v196
  %v213 = vunpack.c.l.b16 %v197
  %v214 = vunpack.c.l.b16 %v198
  %v215 = vunpack.c.l.b16 %v199
  %v216 = vunpack.c.l.b16 %v200
  %v217 = vunpack.c.l.b16 %v201
  %v218 = vpack.c.b16 %v211, %v210
  %v219 = vpack.c.b16 %v213, %v212
  %v220 = vpack.c.b16 %v215, %v214
  %v221 = vpack.c.b16 %v217, %v216
  %226 = vmatprep.subr.bf16.mxu0 0
  %227 = vmatpush1.bf16.msra.mxu0 %v218
  %228 = vmatprep.subr.bf16.mxu0 0
  %229 = vmatpush1.bf16.msra.mxu0 %v219
  %230 = vmatprep.subr.bf16.mxu0 0
  %231 = vmatpush1.bf16.msra.mxu0 %v220
  %232 = vmatprep.subr.bf16.mxu0 0
  %233 = vmatpush1.bf16.msra.mxu0 %v221
  %234 = vmatprep.subr.bf16.mxu0 0
  %235 = vmatpush1.bf16.msra.mxu0 0
  %236 = vmatprep.subr.bf16.mxu0 0
  %237 = vmatpush1.bf16.msra.mxu0 0
  %238 = vmatprep.subr.bf16.mxu0 0
  %239 = vmatpush1.bf16.msra.mxu0 0
  %240 = vmatprep.subr.bf16.mxu0 0
  %241 = vmatpush1.bf16.msra.mxu0 0
  %242 = vmatprep.subr.bf16.mxu0 0
  %243 = vmatpush1.bf16.msra.mxu0 0
  %244 = vmatprep.subr.bf16.mxu0 0
  %245 = vmatpush1.bf16.msra.mxu0 0
  %246 = vmatprep.subr.bf16.mxu0 0
  %247 = vmatpush1.bf16.msra.mxu0 0
  %248 = vmatprep.subr.bf16.mxu0 0
  %249 = vmatpush1.bf16.msra.mxu0 0
  %250 = vmatprep.subr.bf16.mxu0 0
  %251 = vmatpush1.bf16.msra.mxu0 0
  %252 = vmatprep.subr.bf16.mxu0 0
  %253 = vmatpush1.bf16.msra.mxu0 0
  %254 = vmatprep.subr.bf16.mxu0 0
  %255 = vmatpush1.bf16.msra.mxu0 0
  %256 = vmatprep.subr.bf16.mxu0 0
  %257 = vmatpush1.bf16.msra.mxu0 0
  %258 = vmatprep.mubr.bf16.mxu0 0
  %259 = vmatmul.mubr.bf16.gmra.mrb[0].mxu0 %v130
  %v260 = vpop.f32.mrb[0].mxu0
  %v261 = vadd.f32 0.0, %v260
  %v262 = vpop.f32.mrb[0].mxu0
  %v263 = vpop.f32.mrb[0].mxu0
  %v264 = vadd.f32 0.0, %v263
  %v265 = vpop.f32.mrb[0].mxu0
  %266 = vmatprep.mubr.bf16.mxu0 0
  %267 = vmatmul.mubr.bf16.gmra.mrb[0].mxu0 %v133
  %v268 = vpop.f32.mrb[0].mxu0
  %v269 = vadd.f32 0.0, %v268
  %v270 = vpop.f32.mrb[0].mxu0
  %v271 = vpop.f32.mrb[0].mxu0
  %v272 = vadd.f32 0.0, %v271
  %v273 = vpop.f32.mrb[0].mxu0
  %274 = vdwg.mxu0
  %v275 = vrot.slane %v170, 7
  %v276 = vrot.slane %v173, 7
  %v277 = vrot.slane %v178, 7
  %v278 = vrot.slane %v181, 7
  %vm279 = vcmp.lt.s32.totalorder %v22, 1
  %v280 = vsel %vm279, %v277, %v278
  %v281 = vsel %vm279, %v276, %v277
  %v282 = vsel %vm279, %v275, %v276
  %v283 = vsel %vm279, %v278, %v275
  %v284 = vsel %vm74, 1, 0
  %v285 = vsel %vm75, 1, 0
  %v286 = vsel %vm76, 1, 0
  %v287 = vsel %vm77, 1, 0
  %vm288 = vcmp.eq.s32.totalorder %v284, 1
  %vm289 = vcmp.eq.s32.totalorder %v285, 1
  %vm290 = vcmp.eq.s32.totalorder %v286, 1
  %vm291 = vcmp.eq.s32.totalorder %v287, 1
  %v292 = vsel %vm288, 0.0, %v283
  %v293 = vsel %vm289, 0.0, %v282
  %v294 = vsel %vm290, 0.0, %v281
  %v295 = vsel %vm291, 0.0, %v280
  %v296 = vrot.slane %v261, 1
  %v297 = vrot.slane %v264, 1
  %v298 = vrot.slane %v269, 1
  %v299 = vrot.slane %v272, 1
  %vm300 = vcmp.lt.s32.totalorder %v22, 7
  %v301 = vsel %vm300, %v298, %v299
  %v302 = vsel %vm300, %v297, %v298
  %v303 = vsel %vm300, %v296, %v297
  %v304 = vsel %vm300, %v299, %v296
  %v305 = vsel %vm78, 1, 0
  %v306 = vsel %vm79, 1, 0
  %v307 = vsel %vm80, 1, 0
  %v308 = vsel %vm81, 1, 0
  %vm309 = vcmp.eq.s32.totalorder %v305, 1
  %vm310 = vcmp.eq.s32.totalorder %v306, 1
  %vm311 = vcmp.eq.s32.totalorder %v307, 1
  %vm312 = vcmp.eq.s32.totalorder %v308, 1
  %v313 = vsel %vm309, 0.0, %v303
  %v314 = vsel %vm310, 0.0, %v302
  %v315 = vsel %vm311, 0.0, %v301
  %v316 = vsel %vm312, 0.0, %v304
  %v325 = vunpack.c.l.b16 %v185
  %v326 = vunpack.c.l.b16 %v186
  %v327 = vunpack.c.l.b16 %v187
  %v328 = vunpack.c.l.b16 %v188
  %v329 = vunpack.c.l.b16 %v189
  %v330 = vunpack.c.l.b16 %v190
  %v331 = vunpack.c.l.b16 %v191
  %v332 = vunpack.c.l.b16 %v192
  %v333 = vpack.c.b16 %v326, %v325
  %v334 = vpack.c.b16 %v328, %v327
  %v335 = vpack.c.b16 %v330, %v329
  %v336 = vpack.c.b16 %v332, %v331
  %341 = vmatprep.subr.bf16.mxu0 0
  %342 = vmatpush1.bf16.msra.mxu0 %v333
  %343 = vmatprep.subr.bf16.mxu0 0
  %344 = vmatpush1.bf16.msra.mxu0 %v334
  %345 = vmatprep.subr.bf16.mxu0 0
  %346 = vmatpush1.bf16.msra.mxu0 %v335
  %347 = vmatprep.subr.bf16.mxu0 0
  %348 = vmatpush1.bf16.msra.mxu0 %v336
  %349 = vmatprep.subr.bf16.mxu0 0
  %350 = vmatpush1.bf16.msra.mxu0 0
  %351 = vmatprep.subr.bf16.mxu0 0
  %352 = vmatpush1.bf16.msra.mxu0 0
  %353 = vmatprep.subr.bf16.mxu0 0
  %354 = vmatpush1.bf16.msra.mxu0 0
  %355 = vmatprep.subr.bf16.mxu0 0
  %356 = vmatpush1.bf16.msra.mxu0 0
  %357 = vmatprep.subr.bf16.mxu0 0
  %358 = vmatpush1.bf16.msra.mxu0 0
  %359 = vmatprep.subr.bf16.mxu0 0
  %360 = vmatpush1.bf16.msra.mxu0 0
  %361 = vmatprep.subr.bf16.mxu0 0
  %362 = vmatpush1.bf16.msra.mxu0 0
  %363 = vmatprep.subr.bf16.mxu0 0
  %364 = vmatpush1.bf16.msra.mxu0 0
  %365 = vmatprep.subr.bf16.mxu0 0
  %366 = vmatpush1.bf16.msra.mxu0 0
  %367 = vmatprep.subr.bf16.mxu0 0
  %368 = vmatpush1.bf16.msra.mxu0 0
  %369 = vmatprep.subr.bf16.mxu0 0
  %370 = vmatpush1.bf16.msra.mxu0 0
  %371 = vmatprep.subr.bf16.mxu0 0
  %372 = vmatpush1.bf16.msra.mxu0 0
  %373 = vmatprep.mubr.bf16.mxu0 0
  %374 = vmatmul.mubr.bf16.gmra.mrb[0].mxu0 %v130
  %v375 = vpop.f32.mrb[0].mxu0
  %v376 = vadd.f32 %v292, %v375
  %v377 = vpop.f32.mrb[0].mxu0
  %v378 = vpop.f32.mrb[0].mxu0
  %v379 = vadd.f32 %v293, %v378
  %v380 = vpop.f32.mrb[0].mxu0
  %381 = vmatprep.mubr.bf16.mxu0 0
  %382 = vmatmul.mubr.bf16.gmra.mrb[0].mxu0 %v133
  %v383 = vpop.f32.mrb[0].mxu0
  %v384 = vadd.f32 %v294, %v383
  %v385 = vpop.f32.mrb[0].mxu0
  %v386 = vpop.f32.mrb[0].mxu0
  %v387 = vadd.f32 %v295, %v386
  %v388 = vpop.f32.mrb[0].mxu0
  %389 = vdwg.mxu0
  %v390 = vadd.f32 %v376, %v313
  %v391 = vadd.f32 %v379, %v314
  %v392 = vadd.f32 %v384, %v315
  %v393 = vadd.f32 %v387, %v316
  %v394 = vld [vmem:[%s2] sm:$0x1]
  %v396 = vlaneseq
  %v397 = vshrl.u32 %v396, 7
  %v398 = vsub.s32 0, %v397
  %v399 = vrot.slane %v394, %v398
  %v401 = vadd.f32 %v390, %v399
  %v402 = vadd.f32 %v391, %v399
  %v403 = vadd.f32 %v392, %v399
  %v404 = vadd.f32 %v393, %v399
  %v405 = vmax.f32 %v401, 0.0
  %v406 = vmax.f32 %v402, 0.0
  %v407 = vmax.f32 %v403, 0.0
  %v408 = vmax.f32 %v404, 0.0
  %v409 = vpack.c.bf16 %v406, %v405
  %v410 = vpack.c.bf16 %v408, %v407
  %v411 = vld [vmem:[%s3] sm:$0xf]
  %v412 = vld [vmem:[%s3 + $0x4] sm:$0xf]
  %v413 = vld [vmem:[%s3 + $0x8] sm:$0xf]
  %v414 = vld [vmem:[%s3 + $0xc] sm:$0xf]
  %v415 = vld [vmem:[%s3 + $0x10] sm:$0xf]
  %v416 = vld [vmem:[%s3 + $0x14] sm:$0xf]
  %v417 = vld [vmem:[%s3 + $0x18] sm:$0xf]
  %v418 = vld [vmem:[%s3 + $0x1c] sm:$0xf]
  %v419 = vld [vmem:[%s3 + $0x20] sm:$0xf]
  %v420 = vld [vmem:[%s3 + $0x24] sm:$0xf]
  %v421 = vld [vmem:[%s3 + $0x28] sm:$0xf]
  %v422 = vld [vmem:[%s3 + $0x2c] sm:$0xf]
  %v423 = vld [vmem:[%s3 + $0x30] sm:$0xf]
  %v424 = vld [vmem:[%s3 + $0x34] sm:$0xf]
  %v425 = vld [vmem:[%s3 + $0x38] sm:$0xf]
  %v426 = vld [vmem:[%s3 + $0x3c] sm:$0xf]
  %v443 = vunpack.c.l.b16 %v411
  %v444 = vunpack.c.l.b16 %v412
  %v445 = vunpack.c.l.b16 %v413
  %v446 = vunpack.c.l.b16 %v414
  %v447 = vunpack.c.l.b16 %v415
  %v448 = vunpack.c.l.b16 %v416
  %v449 = vunpack.c.l.b16 %v417
  %v450 = vunpack.c.l.b16 %v418
  %v451 = vunpack.c.l.b16 %v419
  %v452 = vunpack.c.l.b16 %v420
  %v453 = vunpack.c.l.b16 %v421
  %v454 = vunpack.c.l.b16 %v422
  %v455 = vunpack.c.l.b16 %v423
  %v456 = vunpack.c.l.b16 %v424
  %v457 = vunpack.c.l.b16 %v425
  %v458 = vunpack.c.l.b16 %v426
  %v459 = vpack.c.b16 %v444, %v443
  %v460 = vpack.c.b16 %v446, %v445
  %v461 = vpack.c.b16 %v448, %v447
  %v462 = vpack.c.b16 %v450, %v449
  %v463 = vpack.c.b16 %v452, %v451
  %v464 = vpack.c.b16 %v454, %v453
  %v465 = vpack.c.b16 %v456, %v455
  %v466 = vpack.c.b16 %v458, %v457
  %475 = vmatprep.subr.bf16.mxu0 0
  %476 = vmatpush1.bf16.msra.mxu0 %v459
  %477 = vmatprep.subr.bf16.mxu0 0
  %478 = vmatpush1.bf16.msra.mxu0 %v460
  %479 = vmatprep.subr.bf16.mxu0 0
  %480 = vmatpush1.bf16.msra.mxu0 %v461
  %481 = vmatprep.subr.bf16.mxu0 0
  %482 = vmatpush1.bf16.msra.mxu0 %v462
  %483 = vmatprep.subr.bf16.mxu0 0
  %484 = vmatpush1.bf16.msra.mxu0 %v463
  %485 = vmatprep.subr.bf16.mxu0 0
  %486 = vmatpush1.bf16.msra.mxu0 %v464
  %487 = vmatprep.subr.bf16.mxu0 0
  %488 = vmatpush1.bf16.msra.mxu0 %v465
  %489 = vmatprep.subr.bf16.mxu0 0
  %490 = vmatpush1.bf16.msra.mxu0 %v466
  %491 = vmatprep.subr.bf16.mxu0 0
  %492 = vmatpush1.bf16.msra.mxu0 0
  %493 = vmatprep.subr.bf16.mxu0 0
  %494 = vmatpush1.bf16.msra.mxu0 0
  %495 = vmatprep.subr.bf16.mxu0 0
  %496 = vmatpush1.bf16.msra.mxu0 0
  %497 = vmatprep.subr.bf16.mxu0 0
  %498 = vmatpush1.bf16.msra.mxu0 0
  %499 = vmatprep.subr.bf16.mxu0 0
  %500 = vmatpush1.bf16.msra.mxu0 0
  %501 = vmatprep.subr.bf16.mxu0 0
  %502 = vmatpush1.bf16.msra.mxu0 0
  %503 = vmatprep.subr.bf16.mxu0 0
  %504 = vmatpush1.bf16.msra.mxu0 0
  %505 = vmatprep.subr.bf16.mxu0 0
  %506 = vmatpush1.bf16.msra.mxu0 0
  %507 = vmatprep.mubr.bf16.mxu0 0
  %508 = vmatmul.mubr.bf16.gmra.mrb[0].mxu0 %v409
  %v509 = vpop.f32.mrb[0].mxu0
  %v510 = vadd.f32 0.0, %v509
  %v511 = vpop.f32.mrb[0].mxu0
  %v512 = vpop.f32.mrb[0].mxu0
  %v513 = vadd.f32 0.0, %v512
  %v514 = vpop.f32.mrb[0].mxu0
  %515 = vmatprep.mubr.bf16.mxu0 0
  %516 = vmatmul.mubr.bf16.gmra.mrb[0].mxu0 %v410
  %v517 = vpop.f32.mrb[0].mxu0
  %v518 = vadd.f32 0.0, %v517
  %v519 = vpop.f32.mrb[0].mxu0
  %v520 = vpop.f32.mrb[0].mxu0
  %v521 = vadd.f32 0.0, %v520
  %v522 = vpop.f32.mrb[0].mxu0
  %523 = vdwg.mxu0
  %s524 = scalar_lea.vmem %s3, 64
  %v525 = vld [vmem:[%s524] sm:$0xf]
  %v526 = vld [vmem:[%s524 + $0x4] sm:$0xf]
  %v527 = vld [vmem:[%s524 + $0x8] sm:$0xf]
  %v528 = vld [vmem:[%s524 + $0xc] sm:$0xf]
  %v529 = vld [vmem:[%s524 + $0x10] sm:$0xf]
  %v530 = vld [vmem:[%s524 + $0x14] sm:$0xf]
  %v531 = vld [vmem:[%s524 + $0x18] sm:$0xf]
  %v532 = vld [vmem:[%s524 + $0x1c] sm:$0xf]
  %v533 = vld [vmem:[%s524 + $0x20] sm:$0xf]
  %v534 = vld [vmem:[%s524 + $0x24] sm:$0xf]
  %v535 = vld [vmem:[%s524 + $0x28] sm:$0xf]
  %v536 = vld [vmem:[%s524 + $0x2c] sm:$0xf]
  %v537 = vld [vmem:[%s524 + $0x30] sm:$0xf]
  %v538 = vld [vmem:[%s524 + $0x34] sm:$0xf]
  %v539 = vld [vmem:[%s524 + $0x38] sm:$0xf]
  %v540 = vld [vmem:[%s524 + $0x3c] sm:$0xf]
  %s541 = scalar_lea.vmem %s3, 128
  %v542 = vld [vmem:[%s541] sm:$0xf]
  %v543 = vld [vmem:[%s541 + $0x4] sm:$0xf]
  %v544 = vld [vmem:[%s541 + $0x8] sm:$0xf]
  %v545 = vld [vmem:[%s541 + $0xc] sm:$0xf]
  %v546 = vld [vmem:[%s541 + $0x10] sm:$0xf]
  %v547 = vld [vmem:[%s541 + $0x14] sm:$0xf]
  %v548 = vld [vmem:[%s541 + $0x18] sm:$0xf]
  %v549 = vld [vmem:[%s541 + $0x1c] sm:$0xf]
  %v550 = vld [vmem:[%s541 + $0x20] sm:$0xf]
  %v551 = vld [vmem:[%s541 + $0x24] sm:$0xf]
  %v552 = vld [vmem:[%s541 + $0x28] sm:$0xf]
  %v553 = vld [vmem:[%s541 + $0x2c] sm:$0xf]
  %v554 = vld [vmem:[%s541 + $0x30] sm:$0xf]
  %v555 = vld [vmem:[%s541 + $0x34] sm:$0xf]
  %v556 = vld [vmem:[%s541 + $0x38] sm:$0xf]
  %v557 = vld [vmem:[%s541 + $0x3c] sm:$0xf]
  %v574 = vunpack.c.l.b16 %v542
  %v575 = vunpack.c.l.b16 %v543
  %v576 = vunpack.c.l.b16 %v544
  %v577 = vunpack.c.l.b16 %v545
  %v578 = vunpack.c.l.b16 %v546
  %v579 = vunpack.c.l.b16 %v547
  %v580 = vunpack.c.l.b16 %v548
  %v581 = vunpack.c.l.b16 %v549
  %v582 = vunpack.c.l.b16 %v550
  %v583 = vunpack.c.l.b16 %v551
  %v584 = vunpack.c.l.b16 %v552
  %v585 = vunpack.c.l.b16 %v553
  %v586 = vunpack.c.l.b16 %v554
  %v587 = vunpack.c.l.b16 %v555
  %v588 = vunpack.c.l.b16 %v556
  %v589 = vunpack.c.l.b16 %v557
  %v590 = vpack.c.b16 %v575, %v574
  %v591 = vpack.c.b16 %v577, %v576
  %v592 = vpack.c.b16 %v579, %v578
  %v593 = vpack.c.b16 %v581, %v580
  %v594 = vpack.c.b16 %v583, %v582
  %v595 = vpack.c.b16 %v585, %v584
  %v596 = vpack.c.b16 %v587, %v586
  %v597 = vpack.c.b16 %v589, %v588
  %606 = vmatprep.subr.bf16.mxu0 0
  %607 = vmatpush1.bf16.msra.mxu0 %v590
  %608 = vmatprep.subr.bf16.mxu0 0
  %609 = vmatpush1.bf16.msra.mxu0 %v591
  %610 = vmatprep.subr.bf16.mxu0 0
  %611 = vmatpush1.bf16.msra.mxu0 %v592
  %612 = vmatprep.subr.bf16.mxu0 0
  %613 = vmatpush1.bf16.msra.mxu0 %v593
  %614 = vmatprep.subr.bf16.mxu0 0
  %615 = vmatpush1.bf16.msra.mxu0 %v594
  %616 = vmatprep.subr.bf16.mxu0 0
  %617 = vmatpush1.bf16.msra.mxu0 %v595
  %618 = vmatprep.subr.bf16.mxu0 0
  %619 = vmatpush1.bf16.msra.mxu0 %v596
  %620 = vmatprep.subr.bf16.mxu0 0
  %621 = vmatpush1.bf16.msra.mxu0 %v597
  %622 = vmatprep.subr.bf16.mxu0 0
  %623 = vmatpush1.bf16.msra.mxu0 0
  %624 = vmatprep.subr.bf16.mxu0 0
  %625 = vmatpush1.bf16.msra.mxu0 0
  %626 = vmatprep.subr.bf16.mxu0 0
  %627 = vmatpush1.bf16.msra.mxu0 0
  %628 = vmatprep.subr.bf16.mxu0 0
  %629 = vmatpush1.bf16.msra.mxu0 0
  %630 = vmatprep.subr.bf16.mxu0 0
  %631 = vmatpush1.bf16.msra.mxu0 0
  %632 = vmatprep.subr.bf16.mxu0 0
  %633 = vmatpush1.bf16.msra.mxu0 0
  %634 = vmatprep.subr.bf16.mxu0 0
  %635 = vmatpush1.bf16.msra.mxu0 0
  %636 = vmatprep.subr.bf16.mxu0 0
  %637 = vmatpush1.bf16.msra.mxu0 0
  %638 = vmatprep.mubr.bf16.mxu0 0
  %639 = vmatmul.mubr.bf16.gmra.mrb[0].mxu0 %v409
  %v640 = vpop.f32.mrb[0].mxu0
  %v641 = vadd.f32 0.0, %v640
  %v642 = vpop.f32.mrb[0].mxu0
  %v643 = vpop.f32.mrb[0].mxu0
  %v644 = vadd.f32 0.0, %v643
  %v645 = vpop.f32.mrb[0].mxu0
  %646 = vmatprep.mubr.bf16.mxu0 0
  %647 = vmatmul.mubr.bf16.gmra.mrb[0].mxu0 %v410
  %v648 = vpop.f32.mrb[0].mxu0
  %v649 = vadd.f32 0.0, %v648
  %v650 = vpop.f32.mrb[0].mxu0
  %v651 = vpop.f32.mrb[0].mxu0
  %v652 = vadd.f32 0.0, %v651
  %v653 = vpop.f32.mrb[0].mxu0
  %654 = vdwg.mxu0
  %v655 = vrot.slane %v510, 7
  %v656 = vrot.slane %v513, 7
  %v657 = vrot.slane %v518, 7
  %v658 = vrot.slane %v521, 7
  %v659 = vsel %vm279, %v657, %v658
  %v660 = vsel %vm279, %v656, %v657
  %v661 = vsel %vm279, %v655, %v656
  %v662 = vsel %vm279, %v658, %v655
  %v663 = vsel %vm288, 0.0, %v662
  %v664 = vsel %vm289, 0.0, %v661
  %v665 = vsel %vm290, 0.0, %v660
  %v666 = vsel %vm291, 0.0, %v659
  %v667 = vrot.slane %v641, 1
  %v668 = vrot.slane %v644, 1
  %v669 = vrot.slane %v649, 1
  %v670 = vrot.slane %v652, 1
  %v671 = vsel %vm300, %v669, %v670
  %v672 = vsel %vm300, %v668, %v669
  %v673 = vsel %vm300, %v667, %v668
  %v674 = vsel %vm300, %v670, %v667
  %v675 = vsel %vm309, 0.0, %v673
  %v676 = vsel %vm310, 0.0, %v672
  %v677 = vsel %vm311, 0.0, %v671
  %v678 = vsel %vm312, 0.0, %v674
  %v695 = vunpack.c.l.b16 %v525
  %v696 = vunpack.c.l.b16 %v526
  %v697 = vunpack.c.l.b16 %v527
  %v698 = vunpack.c.l.b16 %v528
  %v699 = vunpack.c.l.b16 %v529
  %v700 = vunpack.c.l.b16 %v530
  %v701 = vunpack.c.l.b16 %v531
  %v702 = vunpack.c.l.b16 %v532
  %v703 = vunpack.c.l.b16 %v533
  %v704 = vunpack.c.l.b16 %v534
  %v705 = vunpack.c.l.b16 %v535
  %v706 = vunpack.c.l.b16 %v536
  %v707 = vunpack.c.l.b16 %v537
  %v708 = vunpack.c.l.b16 %v538
  %v709 = vunpack.c.l.b16 %v539
  %v710 = vunpack.c.l.b16 %v540
  %v711 = vpack.c.b16 %v696, %v695
  %v712 = vpack.c.b16 %v698, %v697
  %v713 = vpack.c.b16 %v700, %v699
  %v714 = vpack.c.b16 %v702, %v701
  %v715 = vpack.c.b16 %v704, %v703
  %v716 = vpack.c.b16 %v706, %v705
  %v717 = vpack.c.b16 %v708, %v707
  %v718 = vpack.c.b16 %v710, %v709
  %727 = vmatprep.subr.bf16.mxu0 0
  %728 = vmatpush1.bf16.msra.mxu0 %v711
  %729 = vmatprep.subr.bf16.mxu0 0
  %730 = vmatpush1.bf16.msra.mxu0 %v712
  %731 = vmatprep.subr.bf16.mxu0 0
  %732 = vmatpush1.bf16.msra.mxu0 %v713
  %733 = vmatprep.subr.bf16.mxu0 0
  %734 = vmatpush1.bf16.msra.mxu0 %v714
  %735 = vmatprep.subr.bf16.mxu0 0
  %736 = vmatpush1.bf16.msra.mxu0 %v715
  %737 = vmatprep.subr.bf16.mxu0 0
  %738 = vmatpush1.bf16.msra.mxu0 %v716
  %739 = vmatprep.subr.bf16.mxu0 0
  %740 = vmatpush1.bf16.msra.mxu0 %v717
  %741 = vmatprep.subr.bf16.mxu0 0
  %742 = vmatpush1.bf16.msra.mxu0 %v718
  %743 = vmatprep.subr.bf16.mxu0 0
  %744 = vmatpush1.bf16.msra.mxu0 0
  %745 = vmatprep.subr.bf16.mxu0 0
  %746 = vmatpush1.bf16.msra.mxu0 0
  %747 = vmatprep.subr.bf16.mxu0 0
  %748 = vmatpush1.bf16.msra.mxu0 0
  %749 = vmatprep.subr.bf16.mxu0 0
  %750 = vmatpush1.bf16.msra.mxu0 0
  %751 = vmatprep.subr.bf16.mxu0 0
  %752 = vmatpush1.bf16.msra.mxu0 0
  %753 = vmatprep.subr.bf16.mxu0 0
  %754 = vmatpush1.bf16.msra.mxu0 0
  %755 = vmatprep.subr.bf16.mxu0 0
  %756 = vmatpush1.bf16.msra.mxu0 0
  %757 = vmatprep.subr.bf16.mxu0 0
  %758 = vmatpush1.bf16.msra.mxu0 0
  %759 = vmatprep.mubr.bf16.mxu0 0
  %760 = vmatmul.mubr.bf16.gmra.mrb[0].mxu0 %v409
  %v761 = vpop.f32.mrb[0].mxu0
  %v762 = vadd.f32 %v663, %v761
  %v763 = vpop.f32.mrb[0].mxu0
  %v764 = vpop.f32.mrb[0].mxu0
  %v765 = vadd.f32 %v664, %v764
  %v766 = vpop.f32.mrb[0].mxu0
  %767 = vmatprep.mubr.bf16.mxu0 0
  %768 = vmatmul.mubr.bf16.gmra.mrb[0].mxu0 %v410
  %v769 = vpop.f32.mrb[0].mxu0
  %v770 = vadd.f32 %v665, %v769
  %v771 = vpop.f32.mrb[0].mxu0
  %v772 = vpop.f32.mrb[0].mxu0
  %v773 = vadd.f32 %v666, %v772
  %v774 = vpop.f32.mrb[0].mxu0
  %775 = vdwg.mxu0
  %v776 = vadd.f32 %v762, %v675
  %v777 = vadd.f32 %v765, %v676
  %v778 = vadd.f32 %v770, %v677
  %v779 = vadd.f32 %v773, %v678
  %v780 = vld [vmem:[%s4] sm:$0x1]
  %v782 = vlaneseq
  %v783 = vshrl.u32 %v782, 7
  %v784 = vsub.s32 0, %v783
  %v785 = vrot.slane %v780, %v784
  %v787 = vadd.f32 %v776, %v785
  %v788 = vadd.f32 %v777, %v785
  %v789 = vadd.f32 %v778, %v785
  %v790 = vadd.f32 %v779, %v785
  %v791 = vmax.f32 %v787, 0.0
  %v792 = vmax.f32 %v788, 0.0
  %v793 = vmax.f32 %v789, 0.0
  %v794 = vmax.f32 %v790, 0.0
  %v795 = vpack.c.bf16 %v792, %v791
  %v796 = vpack.c.bf16 %v794, %v793
  %v799 = vunpack.c.l.b16 %v795
  %v800 = vunpack.c.h.b16 %v795
  %v801 = vunpack.c.l.b16 %v796
  %v802 = vunpack.c.h.b16 %v796
  %v803 = vpack.c.b16 %v799, %v799
  %v804 = vpack.c.b16 %v800, %v800
  %v805 = vpack.c.b16 %v801, %v801
  %v806 = vpack.c.b16 %v802, %v802
  %811 = vst [vmem:[%s5] sm:$0xf] %v803
  %812 = vst [vmem:[%s5 + $0x4] sm:$0xf] %v804
  %813 = vst [vmem:[%s5 + $0x8] sm:$0xf] %v805
  %814 = vst [vmem:[%s5 + $0xc] sm:$0xf] %v806
  // Predicated region
  $region22: #{double_conv_nchw.1} parent=0 // pred_check
    _
  $region23: #{double_conv_nchw.1} parent=0 // pred_check_branch
    %816 = sbr.rel (0) target = $region25
  $region24: #{double_conv_nchw.1} parent=0 // pred_region
    _
  $region25: #{double_conv_nchw.1} parent=0 // pred_fallthru
    _
  // Predicated region
  $region26: #{double_conv_nchw.1} parent=0 // pred_check
    _
  $region27: #{double_conv_nchw.1} parent=0 // pred_check_branch
    %818 = sbr.rel (0) target = $region29
  $region28: #{double_conv_nchw.1} parent=0 // pred_region
    _
  $region29: #{double_conv_nchw.1} parent=0 // pred_fallthru
    _

</llo_original>
